<compile_context>
chip_gen: v7x
topology: tpu7x:2x2x1
jax: 0.10.0
libtpu: 0.0.40
codegen_flags: <defaults>
</compile_context>

<pallas_src>
import functools

import jax
import jax.numpy as jnp
from jax.experimental import pallas as pl
from jax.experimental.pallas import tpu as pltpu

_LANE = 128
_MAX_TM = 2048  # rows per block; 2048 x 128 f32 = 1 MiB per input block


def _round_up(x, m):
    return ((x + m - 1) // m) * m


def _bce_dice_kernel(x_ref, t_ref, o_ref, *, steps, rows, row_blocks, tm):
    """Accumulate (8, 128) partials of x*t, x, t, BCE into the output block.

    o_ref: (1, 4, 8, 128) f32 output block, resident across the reduction
           axis (same block index for every k), zeroed at k == 0.
    """
    p = pl.program_id(0)
    k = pl.program_id(1)

    @pl.when(k == 0)
    def _():
        o_ref[...] = jnp.zeros_like(o_ref)

    blk = p * steps + k

    @pl.when(blk < row_blocks)
    def _():
        x = x_ref[...].astype(jnp.float32)
        t = t_ref[...].astype(jnp.float32)

        # Row-level tail mask, only emitted when a partial block can exist.
        # Masked rows contribute exactly 0 to every sum (masking happens
        # BEFORE the logs, so garbage in the boundary block cannot leak
        # NaN/Inf into the BCE accumulation).
        if (rows % tm) != 0:
            row = blk * tm + jax.lax.broadcasted_iota(
                jnp.int32, (tm, _LANE), 0)
            valid = row < rows
            x = jnp.where(valid, x, 0.0)
            t = jnp.where(valid, t, 0.0)

        # torch.nn.functional.binary_cross_entropy clamps log terms at -100.
        log_x = jnp.maximum(jnp.log(x), -100.0)
        log_1mx = jnp.maximum(jnp.log(1.0 - x), -100.0)
        bce = -(log_1mx + t * (log_x - log_1mx))

        def fold(v):
            # (tm, 128) -> (8, 128): pure vreg-wise VPU adds (no XLU, no big
            # VMEM accumulator traffic).
            return v.reshape(tm // 8, 8, _LANE).sum(axis=0)

        o_ref[0, 0, :, :] += fold(x * t)   # intersection
        o_ref[0, 1, :, :] += fold(x)       # inputs.sum()
        o_ref[0, 2, :, :] += fold(t)       # targets.sum()
        o_ref[0, 3, :, :] += fold(bce)     # BCE sum (mean taken in wrapper)


def bce_dice_loss(inputs, targets, smooth=1.0):
    """Pallas implementation of bce_dice_loss.forward."""
    n = inputs.size
    assert targets.size == n

    x_flat = inputs.reshape(-1)
    t_flat = targets.reshape(-1)

    rows = n // _LANE
    n_aligned = rows * _LANE

    zero = jnp.zeros((), jnp.float32)
    inter, s_x, s_t, bce_sum = zero, zero, zero, zero

    if rows > 0:
        if n_aligned == n:
            x2 = x_flat.reshape(rows, _LANE)
            t2 = t_flat.reshape(rows, _LANE)
        else:
            # Only the aligned prefix goes through the kernel; the <=127
            # element remainder is handled below with plain jnp (no full-array
            # pad copy).
            x2 = x_flat[:n_aligned].reshape(rows, _LANE)
            t2 = t_flat[:n_aligned].reshape(rows, _LANE)

        # Row-block size: multiple of the sublane tile for the input dtype
        # (8 for 32-bit, 16 for bf16, ...), capped at _MAX_TM.
        itemsize = max(x2.dtype.itemsize, t2.dtype.itemsize, 1)
        sub = 8 if itemsize >= 4 else max(8, 32 // itemsize)
        tm = min(_MAX_TM, _round_up(rows, sub))
        row_blocks = pl.cdiv(rows, tm)

        # Leading axis lets megacore chips split the streaming; on single-TC
        # chips it is a plain outer loop (overshoot blocks clamp + skip).
        n_cores = 2 if row_blocks >= 2 else 1
        steps = pl.cdiv(row_blocks, n_cores)

        def in_map(p, k):
            # Clamp so overshoot grid points re-request the previous block
            # (no extra DMA) and the kernel skips their compute via pl.when.
            return (jnp.minimum(p * steps + k, row_blocks - 1), 0)

        kernel = functools.partial(
            _bce_dice_kernel, steps=steps, rows=rows,
            row_blocks=row_blocks, tm=tm)

        parts = pl.pallas_call(
            kernel,
            out_shape=jax.ShapeDtypeStruct((n_cores, 4, 8, _LANE),
                                           jnp.float32),
            grid=(n_cores, steps),
            in_specs=[
                pl.BlockSpec((tm, _LANE), in_map),
                pl.BlockSpec((tm, _LANE), in_map),
            ],
            out_specs=pl.BlockSpec((1, 4, 8, _LANE),
                                   lambda p, k: (p, 0, 0, 0)),
            compiler_params=pltpu.CompilerParams(
                dimension_semantics=("parallel", "arbitrary"),
            ),
            cost_estimate=pl.CostEstimate(
                flops=12 * n_aligned,
                transcendentals=2 * n_aligned,
                bytes_accessed=(n_aligned * x2.dtype.itemsize
                                + n_aligned * t2.dtype.itemsize
                                + n_cores * 4 * 8 * _LANE * 4),
            ),
        )(x2, t2)

        sums = jnp.sum(parts, axis=(0, 2, 3))  # (4,)
        inter, s_x, s_t, bce_sum = sums[0], sums[1], sums[2], sums[3]

    rem = n - n_aligned
    if rem:
        # Tiny (<128 element) tail handled with plain jnp.
        xr = x_flat[n_aligned:].astype(jnp.float32)
        tr = t_flat[n_aligned:].astype(jnp.float32)
        log_x = jnp.maximum(jnp.log(xr), -100.0)
        log_1mx = jnp.maximum(jnp.log(1.0 - xr), -100.0)
        inter = inter + jnp.sum(xr * tr)
        s_x = s_x + jnp.sum(xr)
        s_t = s_t + jnp.sum(tr)
        bce_sum = bce_sum + jnp.sum(-(log_1mx + tr * (log_x - log_1mx)))

    smooth = jnp.float32(smooth)
    dice_loss = 1.0 - (2.0 * inter + smooth) / (s_x + s_t + smooth)
    bce_mean = bce_sum / jnp.float32(n)
    return bce_mean + dice_loss


def _reference(inputs, targets, smooth=1.0):
    x = inputs.reshape(-1).astype(jnp.float32)
    t = targets.reshape(-1).astype(jnp.float32)
    inter = jnp.sum(x * t)
    dice = 1.0 - (2.0 * inter + smooth) / (jnp.sum(x) + jnp.sum(t) + smooth)
    bce = jnp.mean(
        -(t * jnp.maximum(jnp.log(x), -100.0)
          + (1.0 - t) * jnp.maximum(jnp.log(1.0 - x), -100.0))
    )
    return bce + dice


def _make_inputs(key, shape):
    k1, k2 = jax.random.split(key)
    # inputs are probabilities (F.binary_cross_entropy expects values in [0,1])
    inputs = jax.nn.sigmoid(jax.random.normal(k1, shape, dtype=jnp.float32))
    targets = (jax.random.uniform(k2, shape) > 0.5).astype(jnp.float32)
    return inputs, targets


if __name__ == "__main__":
    key = jax.random.PRNGKey(0)

    # Primary small case (matches the PyTorch module's NCHW usage).
    inputs, targets = _make_inputs(key, (2, 4, 16, 16))
    loss = bce_dice_loss(inputs, targets, smooth=1.0)
    loss = jax.block_until_ready(loss)
    ref = _reference(inputs, targets, smooth=1.0)
    assert jnp.allclose(loss, ref, rtol=1e-5, atol=1e-5), (loss, ref)

    # Extra checks:
    #  (3, 5, 7, 11): non-128-aligned size -> remainder epilogue + row mask.
    #  (2, 4, 128, 192): single large aligned block, no masking.
    #  (2, 8, 160, 160): multiple row blocks -> parallel split + partial
    #                    last block (row mask path on a multi-block grid).
    for shape, tol in [((3, 5, 7, 11), 1e-5),
                       ((2, 4, 128, 192), 1e-5),
                       ((2, 8, 160, 160), 1e-4)]:
        key, sub = jax.random.split(key)
        xi, ti = _make_inputs(sub, shape)
        got = jax.block_until_ready(bce_dice_loss(xi, ti, smooth=1.0))
        want = _reference(xi, ti, smooth=1.0)
        assert jnp.allclose(got, want, rtol=tol, atol=tol), (shape, got, want)

    print("KERNEL_OK")
</pallas_src>

<mosaic_0001>
module attributes {stable_mosaic.version = 11 : i64} {
  func.func @_bce_dice_kernel(%arg0: i32, %arg1: i32, %arg2: memref<16x128xf32, #tpu.memory_space<vmem>>, %arg3: memref<16x128xf32, #tpu.memory_space<vmem>>, %arg4: memref<1x4x8x128xf32, #tpu.memory_space<vmem>>) attributes {dimension_semantics = [#tpu.dimension_semantics<parallel>, #tpu.dimension_semantics<arbitrary>], iteration_bounds = array<i64: 1, 1>, scalar_prefetch = 0 : i64, scratch_operands = 0 : i64, tpu.core_type = #tpu.core_type<tc>, window_params = [{transform_indices = @transform_0, window_bounds = array<i64: 16, 128>}, {transform_indices = @transform_1, window_bounds = array<i64: 16, 128>}, {transform_indices = @transform_2, window_bounds = array<i64: 1, 4, 8, 128>}]} {
    %c0_i32 = arith.constant 0 : i32
    %0 = arith.cmpi eq, %arg1, %c0_i32 : i32
    %1 = arith.extui %0 : i1 to i32
    %c0_i32_0 = arith.constant 0 : i32
    %2 = arith.cmpi ne, %1, %c0_i32_0 : i32
    scf.if %2 {
      %cst = arith.constant 0.000000e+00 : f32
      %8 = vector.broadcast %cst : f32 to vector<1x4x8x128xf32>
      %c0 = arith.constant 0 : index
      %c0_3 = arith.constant 0 : index
      %c0_4 = arith.constant 0 : index
      %c0_5 = arith.constant 0 : index
      %9 = vector.load %arg4[%c0, %c0_3, %c0_4, %c0_5] : memref<1x4x8x128xf32, #tpu.memory_space<vmem>>, vector<1x4x8x128xf32>
      tpu.vector_store %arg4[%c0, %c0_3, %c0_4, %c0_5], %8 {strides = array<i32>} : memref<1x4x8x128xf32, #tpu.memory_space<vmem>>, vector<1x4x8x128xf32>,
    } else {
    }
    %c1_i32 = arith.constant 1 : i32
    %3 = arith.muli %arg0, %c1_i32 : i32
    %4 = arith.addi %3, %arg1 : i32
    %c1_i32_1 = arith.constant 1 : i32
    %5 = arith.cmpi slt, %4, %c1_i32_1 : i32
    %6 = arith.extui %5 : i1 to i32
    %c0_i32_2 = arith.constant 0 : i32
    %7 = arith.cmpi ne, %6, %c0_i32_2 : i32
    scf.if %7 {
      %c0 = arith.constant 0 : index
      %c0_3 = arith.constant 0 : index
      %8 = vector.load %arg2[%c0, %c0_3] : memref<16x128xf32, #tpu.memory_space<vmem>>, vector<16x128xf32>
      %c0_4 = arith.constant 0 : index
      %c0_5 = arith.constant 0 : index
      %9 = vector.load %arg3[%c0_4, %c0_5] : memref<16x128xf32, #tpu.memory_space<vmem>>, vector<16x128xf32>
      %10 = math.log %8 : vector<16x128xf32>
      %cst = arith.constant -1.000000e+02 : f32
      %11 = vector.broadcast %cst : f32 to vector<16x128xf32>
      %12 = arith.maximumf %10, %11 : vector<16x128xf32>
      %cst_6 = arith.constant 1.000000e+00 : f32
      %13 = vector.broadcast %cst_6 : f32 to vector<16x128xf32>
      %14 = arith.subf %13, %8 : vector<16x128xf32>
      %15 = math.log %14 : vector<16x128xf32>
      %cst_7 = arith.constant -1.000000e+02 : f32
      %16 = vector.broadcast %cst_7 : f32 to vector<16x128xf32>
      %17 = arith.maximumf %15, %16 : vector<16x128xf32>
      %18 = arith.subf %12, %17 : vector<16x128xf32>
      %19 = arith.mulf %9, %18 : vector<16x128xf32>
      %20 = arith.addf %17, %19 : vector<16x128xf32>
      %cst_8 = arith.constant 0.000000e+00 : f32
      %21 = vector.broadcast %cst_8 : f32 to vector<16x128xf32>
      %22 = arith.subf %21, %20 : vector<16x128xf32>
      %c0_9 = arith.constant 0 : index
      %c0_10 = arith.constant 0 : index
      %c0_11 = arith.constant 0 : index
      %c0_12 = arith.constant 0 : index
      %23 = vector.load %arg4[%c0_9, %c0_10, %c0_11, %c0_12] : memref<1x4x8x128xf32, #tpu.memory_space<vmem>>, vector<1x1x8x128xf32>
      %24 = vector.shape_cast %23 : vector<1x1x8x128xf32> to vector<8x128xf32>
      %25 = arith.mulf %8, %9 : vector<16x128xf32>
      %26 = vector.shape_cast %25 : vector<16x128xf32> to vector<2x8x128xf32>
      %cst_13 = arith.constant dense<0.000000e+00> : vector<8x128xf32>
      %27 = vector.multi_reduction <add>, %26, %cst_13 [0] : vector<2x8x128xf32> to vector<8x128xf32>
      %28 = arith.addf %24, %27 : vector<8x128xf32>
      %c0_14 = arith.constant 0 : index
      %c0_15 = arith.constant 0 : index
      %c0_16 = arith.constant 0 : index
      %c0_17 = arith.constant 0 : index
      %29 = vector.load %arg4[%c0_14, %c0_15, %c0_16, %c0_17] : memref<1x4x8x128xf32, #tpu.memory_space<vmem>>, vector<1x1x8x128xf32>
      %30 = vector.shape_cast %29 : vector<1x1x8x128xf32> to vector<8x128xf32>
      %31 = vector.shape_cast %28 : vector<8x128xf32> to vector<1x1x8x128xf32>
      tpu.vector_store %arg4[%c0_14, %c0_15, %c0_16, %c0_17], %31 {strides = array<i32>} : memref<1x4x8x128xf32, #tpu.memory_space<vmem>>, vector<1x1x8x128xf32>,
      %c0_18 = arith.constant 0 : index
      %c1 = arith.constant 1 : index
      %c0_19 = arith.constant 0 : index
      %c0_20 = arith.constant 0 : index
      %32 = vector.load %arg4[%c0_18, %c1, %c0_19, %c0_20] : memref<1x4x8x128xf32, #tpu.memory_space<vmem>>, vector<1x1x8x128xf32>
      %33 = vector.shape_cast %32 : vector<1x1x8x128xf32> to vector<8x128xf32>
      %34 = vector.shape_cast %8 : vector<16x128xf32> to vector<2x8x128xf32>
      %cst_21 = arith.constant dense<0.000000e+00> : vector<8x128xf32>
      %35 = vector.multi_reduction <add>, %34, %cst_21 [0] : vector<2x8x128xf32> to vector<8x128xf32>
      %36 = arith.addf %33, %35 : vector<8x128xf32>
      %c0_22 = arith.constant 0 : index
      %c1_23 = arith.constant 1 : index
      %c0_24 = arith.constant 0 : index
      %c0_25 = arith.constant 0 : index
      %37 = vector.load %arg4[%c0_22, %c1_23, %c0_24, %c0_25] : memref<1x4x8x128xf32, #tpu.memory_space<vmem>>, vector<1x1x8x128xf32>
      %38 = vector.shape_cast %37 : vector<1x1x8x128xf32> to vector<8x128xf32>
      %39 = vector.shape_cast %36 : vector<8x128xf32> to vector<1x1x8x128xf32>
      tpu.vector_store %arg4[%c0_22, %c1_23, %c0_24, %c0_25], %39 {strides = array<i32>} : memref<1x4x8x128xf32, #tpu.memory_space<vmem>>, vector<1x1x8x128xf32>,
      %c0_26 = arith.constant 0 : index
      %c2 = arith.constant 2 : index
      %c0_27 = arith.constant 0 : index
      %c0_28 = arith.constant 0 : index
      %40 = vector.load %arg4[%c0_26, %c2, %c0_27, %c0_28] : memref<1x4x8x128xf32, #tpu.memory_space<vmem>>, vector<1x1x8x128xf32>
      %41 = vector.shape_cast %40 : vector<1x1x8x128xf32> to vector<8x128xf32>
      %42 = vector.shape_cast %9 : vector<16x128xf32> to vector<2x8x128xf32>
      %cst_29 = arith.constant dense<0.000000e+00> : vector<8x128xf32>
      %43 = vector.multi_reduction <add>, %42, %cst_29 [0] : vector<2x8x128xf32> to vector<8x128xf32>
      %44 = arith.addf %41, %43 : vector<8x128xf32>
      %c0_30 = arith.constant 0 : index
      %c2_31 = arith.constant 2 : index
      %c0_32 = arith.constant 0 : index
      %c0_33 = arith.constant 0 : index
      %45 = vector.load %arg4[%c0_30, %c2_31, %c0_32, %c0_33] : memref<1x4x8x128xf32, #tpu.memory_space<vmem>>, vector<1x1x8x128xf32>
      %46 = vector.shape_cast %45 : vector<1x1x8x128xf32> to vector<8x128xf32>
      %47 = vector.shape_cast %44 : vector<8x128xf32> to vector<1x1x8x128xf32>
      tpu.vector_store %arg4[%c0_30, %c2_31, %c0_32, %c0_33], %47 {strides = array<i32>} : memref<1x4x8x128xf32, #tpu.memory_space<vmem>>, vector<1x1x8x128xf32>,
      %c0_34 = arith.constant 0 : index
      %c3 = arith.constant 3 : index
      %c0_35 = arith.constant 0 : index
      %c0_36 = arith.constant 0 : index
      %48 = vector.load %arg4[%c0_34, %c3, %c0_35, %c0_36] : memref<1x4x8x128xf32, #tpu.memory_space<vmem>>, vector<1x1x8x128xf32>
      %49 = vector.shape_cast %48 : vector<1x1x8x128xf32> to vector<8x128xf32>
      %50 = vector.shape_cast %22 : vector<16x128xf32> to vector<2x8x128xf32>
      %cst_37 = arith.constant dense<0.000000e+00> : vector<8x128xf32>
      %51 = vector.multi_reduction <add>, %50, %cst_37 [0] : vector<2x8x128xf32> to vector<8x128xf32>
      %52 = arith.addf %49, %51 : vector<8x128xf32>
      %c0_38 = arith.constant 0 : index
      %c3_39 = arith.constant 3 : index
      %c0_40 = arith.constant 0 : index
      %c0_41 = arith.constant 0 : index
      %53 = vector.load %arg4[%c0_38, %c3_39, %c0_40, %c0_41] : memref<1x4x8x128xf32, #tpu.memory_space<vmem>>, vector<1x1x8x128xf32>
      %54 = vector.shape_cast %53 : vector<1x1x8x128xf32> to vector<8x128xf32>
      %55 = vector.shape_cast %52 : vector<8x128xf32> to vector<1x1x8x128xf32>
      tpu.vector_store %arg4[%c0_38, %c3_39, %c0_40, %c0_41], %55 {strides = array<i32>} : memref<1x4x8x128xf32, #tpu.memory_space<vmem>>, vector<1x1x8x128xf32>,
    } else {
    }
    return
  }
  func.func @transform_0(%arg0: i32, %arg1: i32) -> (i32, i32) {
    %c1_i32 = arith.constant 1 : i32
    %0 = arith.muli %arg0, %c1_i32 : i32
    %1 = arith.addi %0, %arg1 : i32
    %c0_i32 = arith.constant 0 : i32
    %2 = arith.minsi %1, %c0_i32 : i32
    %c0_i32_0 = arith.constant 0 : i32
    %c0_i32_1 = arith.constant 0 : i32
    return %2, %c0_i32_0 : i32, i32
  }
  func.func @transform_1(%arg0: i32, %arg1: i32) -> (i32, i32) {
    %c1_i32 = arith.constant 1 : i32
    %0 = arith.muli %arg0, %c1_i32 : i32
    %1 = arith.addi %0, %arg1 : i32
    %c0_i32 = arith.constant 0 : i32
    %2 = arith.minsi %1, %c0_i32 : i32
    %c0_i32_0 = arith.constant 0 : i32
    %c0_i32_1 = arith.constant 0 : i32
    return %2, %c0_i32_0 : i32, i32
  }
  func.func @transform_2(%arg0: i32, %arg1: i32) -> (i32, i32, i32, i32) {
    %c0_i32 = arith.constant 0 : i32
    %c0_i32_0 = arith.constant 0 : i32
    %c0_i32_1 = arith.constant 0 : i32
    %c0_i32_2 = arith.constant 0 : i32
    return %arg0, %c0_i32, %c0_i32_0, %c0_i32_1 : i32, i32, i32, i32
  }
}

</mosaic_0001>

<llo_original>
// kernel: tpu_custom_call.1
$region0: #{tpu_custom_call.1}
  #allocation0 [shape = 'u32[]', space=smem, size = 0x4, offset = 0x4, fixed_abs, tag = 'smem constant byte address 0x4 - core index']
  #allocation1 [shape = 'u32[144,128]{1,0:T(1,128)}', space=vmem, size = 0x12000, scoped, tag = 'internal scratch']
  %s0 = inlined_call_operand.hbm [shape: f32[16,128], index: 0, kind: input, shape index: {}]
  %s1 = inlined_call_operand.hbm [shape: f32[16,128], index: 1, kind: input, shape index: {}]
  %s2 = inlined_call_operand.hbm [shape: f32[1,4,8,128], index: 2, kind: output, shape index: {}]
  %s3 = sld [smem:[#allocation0]]
  $region34: #{tpu_custom_call.1} parent=0
    _
  %s5 = ssub.s32 1, %s3
  %s6 = scalar_select 0, %s5, %s3
  $region1: #{tpu_custom_call.1} parent=0
    #allocation2 [shape = 'u8[8192]{0}', space=vmem, size = 0x2000, scoped, tag = 'input window, operand 0, single buffered']
    #allocation3 [shape = 's32[1]{0}', space=sflag, size = 0x4, scoped, tag = 'scoped memory for tpu_custom_call.1']
    #allocation4 [shape = 's32[1]{0}', space=sflag, size = 0x4, scoped, tag = 'scoped memory for tpu_custom_call.1']
    #allocation5 [shape = 'u8[8192]{0}', space=vmem, size = 0x2000, scoped, tag = 'input window, operand 1, single buffered']
    #allocation6 [shape = 's32[1]{0}', space=sflag, size = 0x4, scoped, tag = 'scoped memory for tpu_custom_call.1']
    #allocation7 [shape = 'u8[16384]{0}', space=vmem, size = 0x4000, scoped, tag = 'output window, operand 0, single buffered']
    %7 = vsyncpa [#allocation3], 0
    %8 = vsyncpa [#allocation6], 0
    %9 = vsyncpa [#allocation4], 0
    // Predicated region
    $region2: #{tpu_custom_call.1} parent=1 // pred_check
      _
    $region3: #{tpu_custom_call.1} parent=1 // pred_check_branch
      %11 = sbr.rel (0) target = $region5
    $region4: #{tpu_custom_call.1} parent=1 // pred_region
      %s12 = sadd.s32 0, 0
      %p13 = scmp.lt.s32.totalorder %s12, 0
      %s14 = scalar_select %p13, %s12, 0
      %s15 = smul.u32 2, %s14
      %s17 = ssub.s32 256, 256
      %18 = vsyncadd [#allocation3], %s17
      %s19 = smul.addr %s15, 128
      %s20 = scalar_lea.hbm %s0, %s19
      %s21 = sshll.u32 [#allocation2], 4
      %s22 = int_to_ptr.vmem [resolvable:$true] %s21
      %27 = dma.hbm_to_vmem [thread:$0]  %s20, 256, %s22, [#allocation3], 128, 128, 8
    $region5: #{tpu_custom_call.1} parent=1 // pred_fallthru
      _
    // Predicated region
    $region6: #{tpu_custom_call.1} parent=1 // pred_check
      _
    $region7: #{tpu_custom_call.1} parent=1 // pred_check_branch
      %29 = sbr.rel (0) target = $region9
    $region8: #{tpu_custom_call.1} parent=1 // pred_region
      %s30 = sadd.s32 0, 0
      %p31 = scmp.lt.s32.totalorder %s30, 0
      %s32 = scalar_select %p31, %s30, 0
      %s33 = smul.u32 2, %s32
      %s35 = ssub.s32 256, 256
      %36 = vsyncadd [#allocation6], %s35
      %s37 = smul.addr %s33, 128
      %s38 = scalar_lea.hbm %s1, %s37
      %s39 = sshll.u32 [#allocation5], 4
      %s40 = int_to_ptr.vmem [resolvable:$true] %s39
      %45 = dma.hbm_to_vmem [thread:$0]  %s38, 256, %s40, [#allocation6], 128, 128, 8
    $region9: #{tpu_custom_call.1} parent=1 // pred_fallthru
      _
    // Predicated region
    $region10: #{tpu_custom_call.1} parent=1 // pred_check
      _
    $region11: #{tpu_custom_call.1} parent=1 // pred_check_branch
      %47 = sbr.rel (0) target = $region13
    $region12: #{tpu_custom_call.1} parent=1 // pred_region
      %48 = dma.done [#allocation3], 256
    $region13: #{tpu_custom_call.1} parent=1 // pred_fallthru
      _
    // Predicated region
    $region14: #{tpu_custom_call.1} parent=1 // pred_check
      _
    $region15: #{tpu_custom_call.1} parent=1 // pred_check_branch
      %50 = sbr.rel (0) target = $region17
    $region16: #{tpu_custom_call.1} parent=1 // pred_region
      %51 = dma.done [#allocation6], 256
    $region17: #{tpu_custom_call.1} parent=1 // pred_fallthru
      _
    %s52 = sadd.s32 0, 0
    %p53 = scmp.lt.s32.totalorder %s52, 0
    %s54 = scalar_select %p53, %s52, 0
    %s55 = smul.u32 2, %s54
    %s56 = sadd.s32 0, 0
    %p57 = scmp.lt.s32.totalorder %s56, 0
    %s58 = scalar_select %p57, %s56, 0
    %s59 = smul.u32 2, %s58
    %p60 = scmp.eq.s32.totalorder 0, 0
    // Predicated region
    $region18: #{tpu_custom_call.1} parent=1 // pred_check
      %p61 = pneg %p60
    $region19: #{tpu_custom_call.1} parent=1 // pred_check_branch
      %63 = sbr.rel (%p61) target = $region21
    $region20: #{tpu_custom_call.1} parent=1 // pred_region
      %64 = vst [vmem:[#allocation7] sm:$0xff] 0.0
      %65 = vst [vmem:[#allocation7 + $0x8] sm:$0xff] 0.0
      %66 = vst [vmem:[#allocation7 + $0x10] sm:$0xff] 0.0
      %67 = vst [vmem:[#allocation7 + $0x18] sm:$0xff] 0.0
    $region21: #{tpu_custom_call.1} parent=1 // pred_fallthru
      _
    %s68 = sadd.s32 0, 0
    %p69 = scmp.lt.s32.totalorder %s68, 1
    // Predicated region
    $region22: #{tpu_custom_call.1} parent=1 // pred_check
      %p70 = pneg %p69
    $region23: #{tpu_custom_call.1} parent=1 // pred_check_branch
      %72 = sbr.rel (%p70) target = $region25
    $region24: #{tpu_custom_call.1} parent=1 // pred_region
      %v73 = vld [vmem:[#allocation2] sm:$0xff]
      %v74 = vld [vmem:[#allocation2 + $0x8] sm:$0xff]
      %v75 = vld [vmem:[#allocation5] sm:$0xff]
      %v76 = vld [vmem:[#allocation5 + $0x8] sm:$0xff]
      %v77 = vlog2.pop %v73
      %v78 = vmul.f32 %v77, 0.6931472
      %v79 = vlog2.pop %v74
      %v80 = vmul.f32 %v79, 0.6931472
      %v81 = vmax.f32 %v78, -100.0
      %v82 = vmax.f32 %v80, -100.0
      %v83 = vsub.f32 1.0, %v73
      %v84 = vsub.f32 1.0, %v74
      %v85 = vlog2.pop %v83
      %v86 = vmul.f32 %v85, 0.6931472
      %v87 = vlog2.pop %v84
      %v88 = vmul.f32 %v87, 0.6931472
      %v89 = vmax.f32 %v86, -100.0
      %v90 = vmax.f32 %v88, -100.0
      %v91 = vsub.f32 %v81, %v89
      %v92 = vsub.f32 %v82, %v90
      %v93 = vmul.f32 %v75, %v91
      %v94 = vmul.f32 %v76, %v92
      %v95 = vadd.f32 %v89, %v93
      %v96 = vadd.f32 %v90, %v94
      %v97 = vsub.f32 0.0, %v95
      %v98 = vsub.f32 0.0, %v96
      %v99 = vld [vmem:[#allocation7] sm:$0xff]
      %v100 = vmul.f32 %v73, %v75
      %v101 = vmul.f32 %v74, %v76
      %v102 = vadd.f32 %v100, %v101
      %v103 = vadd.f32 %v99, %v102
      %104 = vst [vmem:[#allocation7] sm:$0xff] %v103
      %s105 = scalar_lea.vmem [#allocation7], 8
      %v106 = vld [vmem:[%s105] sm:$0xff]
      %v107 = vadd.f32 %v73, %v74
      %v108 = vadd.f32 %v106, %v107
      %109 = vst [vmem:[%s105] sm:$0xff] %v108
      %s110 = scalar_lea.vmem [#allocation7], 16
      %v111 = vld [vmem:[%s110] sm:$0xff]
      %v112 = vadd.f32 %v75, %v76
      %v113 = vadd.f32 %v111, %v112
      %114 = vst [vmem:[%s110] sm:$0xff] %v113
      %s115 = scalar_lea.vmem [#allocation7], 24
      %v116 = vld [vmem:[%s115] sm:$0xff]
      %v117 = vadd.f32 %v97, %v98
      %v118 = vadd.f32 %v116, %v117
      %119 = vst [vmem:[%s115] sm:$0xff] %v118
    $region25: #{tpu_custom_call.1} parent=1 // pred_fallthru
      _
    // Predicated region
    $region26: #{tpu_custom_call.1} parent=1 // pred_check
      _
    $region27: #{tpu_custom_call.1} parent=1 // pred_check_branch
      %121 = sbr.rel (0) target = $region29
    $region28: #{tpu_custom_call.1} parent=1 // pred_region
      %s123 = ssub.s32 512, 512
      %124 = vsyncadd [#allocation4], %s123
      %s125 = sshll.u32 [#allocation7], 4
      %s126 = int_to_ptr.vmem [resolvable:$true] %s125
      %131 = dma.vmem_to_hbm [thread:$0]  %s126, 512, %s2, [#allocation4], 128, 128, 8
    $region29: #{tpu_custom_call.1} parent=1 // pred_fallthru
      _
    // Predicated region
    $region30: #{tpu_custom_call.1} parent=1 // pred_check
      _
    $region31: #{tpu_custom_call.1} parent=1 // pred_check_branch
      %133 = sbr.rel (0) target = $region33
    $region32: #{tpu_custom_call.1} parent=1 // pred_region
      %134 = dma.done [#allocation4], 512
    $region33: #{tpu_custom_call.1} parent=1 // pred_fallthru
      _
    %135 = vsyncpa [#allocation3], 1
    %136 = vsyncpa [#allocation6], 1
    %137 = vsyncpa [#allocation4], 1

</llo_original>
